<compile_context>
chip_gen: v6e
topology: v6e:2x2x1
jax: 0.10.0
libtpu: 0.0.40
codegen_flags: <defaults>
</compile_context>

<pallas_src>
import math
import jax
import jax.numpy as jnp
from jax.experimental import pallas as pl
from jax.experimental.pallas import tpu as pltpu

_LANE = 128
_SUBLANE = 8


def _round_up(x, m):
    return (x + m - 1) // m * m


def _pe_kernel(x_ref, w_ref, b_ref, pe_ref, o_ref):
    # x_ref:  (TS, B, d_in)   sequence tile, all batch rows, unpadded K
    # w_ref:  (d_in, TN)      weight N-tile (re-fetched only when n changes)
    # b_ref:  (1, TN)
    # pe_ref: (TS, TN)
    # o_ref:  (TS, B, TN)
    ts, bsz, d_in = x_ref.shape
    tn = w_ref.shape[1]
    w_v = w_ref[...]
    b_v = b_ref[...]
    pe_v = pe_ref[...]

    if bsz % _SUBLANE == 0:
        # B sublane-aligned: (TS,B,K)->(TS*B,K) and back are free retilings, so
        # the whole tile is one big-M MXU matmul.
        x2 = x_ref[...].reshape(ts * bsz, d_in)
        y = jnp.dot(x2, w_v, preferred_element_type=jnp.float32)
        y = jnp.maximum(y + b_v, 0.0)                       # bias + ReLU (f32)
        y = y.reshape(ts, bsz, tn) + pe_v[:, None, :]       # +pe, bcast over B
        o_ref[...] = y.astype(o_ref.dtype)
    else:
        # B not sublane-aligned: per-batch (TS,K)@(K,TN) matmuls avoid the
        # tile-crossing reshape/relayout entirely (B is small & static).
        for bi in range(bsz):
            yb = jnp.dot(x_ref[:, bi, :], w_v, preferred_element_type=jnp.float32)
            yb = jnp.maximum(yb + b_v, 0.0) + pe_v
            o_ref[:, bi, :] = yb.astype(o_ref.dtype)


def positional_encoding_forward(x, w, b, pe, *, block_rows=1024,
                                compute_dtype=None, out_dtype=None):
    """relu(x @ w + b) + pe[:S]; dropout = identity (eval mode).

    x:  (S, B, d_in)        w: (d_in, d_model)
    b:  (d_model,)          pe: (max_len, d_model)
    compute_dtype: optionally cast x/w (e.g. jnp.bfloat16) for the MXU matmul;
                   accumulation / bias / ReLU / pe stay f32.
    out_dtype:     output dtype (default: x.dtype).
    """
    S, B, d_in = x.shape
    d_in_w, d_model = w.shape
    assert d_in_w == d_in
    max_len, d_model_pe = pe.shape
    assert d_model_pe == d_model and S <= max_len

    out_dtype = out_dtype or x.dtype
    if compute_dtype is not None:
        x = x.astype(compute_dtype)
        w = w.astype(compute_dtype)

    # ---- sequence tile: multiple of 8 (sublane rule for pe/out blocks) ------
    S8 = _round_up(S, _SUBLANE)
    TS = max(_SUBLANE, (block_rows // max(B, 1)) // _SUBLANE * _SUBLANE)
    if S8 >= 2 * _SUBLANE:
        # Keep >=2 sequence tiles so the "parallel" axis can span both v7x TCs.
        TS = min(TS, _round_up(S8 // 2, _SUBLANE))
    TS = min(TS, S8)
    n_s = pl.cdiv(S, TS)          # partial edge tile is handled by Pallas

    # ---- d_model (lane) padding + N tile ------------------------------------
    d_model_p = _round_up(d_model, _LANE)
    rows = TS * B
    # Bound the per-buffer (W + out + pe + b) footprint to ~6 MiB so the
    # default double-buffered blocks fit every generation's scoped VMEM.
    denom = 4 * (d_in + rows + TS + 1)
    tn_cap = max(_LANE, ((6 << 20) // denom) // _LANE * _LANE)
    TN = min(d_model_p, tn_cap)
    n_n = pl.cdiv(d_model_p, TN)

    # ---- params: pad the lane dim only when it is not already 128-aligned ---
    if d_model_p != d_model:
        w_in = jnp.pad(w, ((0, 0), (0, d_model_p - d_model)))
        b_in = jnp.pad(b, (0, d_model_p - d_model)).reshape(1, d_model_p)
        pe_in = jnp.pad(pe[:S], ((0, 0), (0, d_model_p - d_model)))  # rows sliced first
    else:
        w_in = w
        b_in = b.reshape(1, d_model)
        pe_in = pe                 # index the table in place; only first ~S rows read

    # ---- explicit VMEM budget from the block sizes (2 buffers each) ---------
    x_item = jnp.dtype(x.dtype).itemsize
    w_item = jnp.dtype(w_in.dtype).itemsize
    o_item = jnp.dtype(out_dtype).itemsize
    blk_bytes = (TS * B * d_in * x_item + d_in * TN * w_item
                 + TN * 4 + TS * TN * 4 + TS * B * TN * o_item)
    vmem_limit = int(min(max(2 * blk_bytes + (8 << 20), 32 << 20), 56 << 20))

    out = pl.pallas_call(
        _pe_kernel,
        out_shape=jax.ShapeDtypeStruct((S, B, d_model_p), out_dtype),
        grid_spec=pl.GridSpec(
            grid=(n_n, n_s),                                   # N outer, seq inner
            in_specs=[
                pl.BlockSpec((TS, B, d_in), lambda n, s: (s, 0, 0)),  # x (unpadded K)
                pl.BlockSpec((d_in, TN), lambda n, s: (0, n)),        # W (n_n fetches)
                pl.BlockSpec((1, TN), lambda n, s: (0, n)),           # bias
                pl.BlockSpec((TS, TN), lambda n, s: (s, n)),          # pe rows
            ],
            out_specs=pl.BlockSpec((TS, B, TN), lambda n, s: (s, 0, n)),
        ),
        compiler_params=pltpu.CompilerParams(
            dimension_semantics=("parallel", "parallel"),
            vmem_limit_bytes=vmem_limit,
        ),
    )(x, w_in, b_in, pe_in)

    # Zero-copy return when d_model is already lane-aligned.
    return out if d_model_p == d_model else out[:, :, :d_model]


def make_pe_table(max_len, d_model, dtype=jnp.float32):
    position = jnp.arange(max_len, dtype=jnp.float32)[:, None]
    div_term = jnp.exp(jnp.arange(0, d_model, 2, dtype=jnp.float32)
                       * (-math.log(10000.0) / d_model))
    pe = jnp.zeros((max_len, d_model), jnp.float32)
    pe = pe.at[:, 0::2].set(jnp.sin(position * div_term))
    pe = pe.at[:, 1::2].set(jnp.cos(position * div_term))
    return pe.astype(dtype)


if __name__ == "__main__":
    def run_case(S, B, d_in, d_model, max_len, seed=0):
        key = jax.random.PRNGKey(seed)
        kx, kw, kb = jax.random.split(key, 3)
        # Inputs quantized to small exact binary fractions so the MXU matmul is
        # exact regardless of precision/pass count -> the tight tolerance below
        # checks structure (tiling, padding, pe alignment), not float noise.
        x = jnp.round(jax.random.normal(kx, (S, B, d_in), jnp.float32) * 2.0) / 2.0
        bound = 1.0 / math.sqrt(d_in)
        w = jnp.round(jax.random.uniform(kw, (d_in, d_model), jnp.float32,
                                         minval=-bound, maxval=bound) * 16.0) / 16.0
        b = jax.random.uniform(kb, (d_model,), jnp.float32,
                               minval=-bound, maxval=bound)
        pe = make_pe_table(max_len, d_model)

        out = jax.block_until_ready(jax.jit(positional_encoding_forward)(x, w, b, pe))
        ref = jnp.maximum(
            jnp.einsum("sbi,io->sbo", x, w,
                       precision=jax.lax.Precision.HIGHEST) + b, 0.0
        ) + pe[:S][:, None, :]
        assert out.shape == (S, B, d_model)
        err = float(jnp.max(jnp.abs(out - ref)))
        assert jnp.allclose(out, ref, atol=1e-5, rtol=1e-5), err

    # Unaligned shapes: lane padding, partial seq tile, B % 8 != 0 (loop path).
    run_case(S=12, B=4, d_in=16, d_model=48, max_len=128, seed=0)
    # Aligned shapes: zero-copy path (no padding, no output slice, fused matmul).
    run_case(S=16, B=8, d_in=32, d_model=128, max_len=128, seed=1)
    print("KERNEL_OK")
</pallas_src>

<mosaic_0001>
module attributes {stable_mosaic.version = 11 : i64} {
  func.func @_pe_kernel(%arg0: i32, %arg1: i32, %arg2: memref<8x4x16xf32, #tpu.memory_space<vmem>>, %arg3: memref<16x128xf32, #tpu.memory_space<vmem>>, %arg4: memref<1x128xf32, #tpu.memory_space<vmem>>, %arg5: memref<8x128xf32, #tpu.memory_space<vmem>>, %arg6: memref<8x4x128xf32, #tpu.memory_space<vmem>>) attributes {dimension_semantics = [#tpu.dimension_semantics<parallel>, #tpu.dimension_semantics<parallel>], iteration_bounds = array<i64: 1, 2>, scalar_prefetch = 0 : i64, scratch_operands = 0 : i64, tpu.core_type = #tpu.core_type<tc>, window_params = [{transform_indices = @transform_0, window_bounds = array<i64: 8, 4, 16>}, {transform_indices = @transform_1, window_bounds = array<i64: 16, 128>}, {transform_indices = @transform_2, window_bounds = array<i64: 1, 128>}, {transform_indices = @transform_3, window_bounds = array<i64: 8, 128>}, {transform_indices = @transform_4, window_bounds = array<i64: 8, 4, 128>}]} {
    %c0 = arith.constant 0 : index
    %c0_0 = arith.constant 0 : index
    %0 = vector.load %arg3[%c0, %c0_0] : memref<16x128xf32, #tpu.memory_space<vmem>>, vector<16x128xf32>
    %c0_1 = arith.constant 0 : index
    %c0_2 = arith.constant 0 : index
    %1 = vector.load %arg4[%c0_1, %c0_2] : memref<1x128xf32, #tpu.memory_space<vmem>>, vector<1x128xf32>
    %c0_3 = arith.constant 0 : index
    %c0_4 = arith.constant 0 : index
    %2 = vector.load %arg5[%c0_3, %c0_4] : memref<8x128xf32, #tpu.memory_space<vmem>>, vector<8x128xf32>
    %c0_5 = arith.constant 0 : index
    %c0_6 = arith.constant 0 : index
    %c0_7 = arith.constant 0 : index
    %3 = vector.load %arg2[%c0_5, %c0_6, %c0_7] : memref<8x4x16xf32, #tpu.memory_space<vmem>>, vector<8x1x16xf32>
    %4 = vector.shape_cast %3 : vector<8x1x16xf32> to vector<8x16xf32>
    %cst = arith.constant dense<0.000000e+00> : vector<8x128xf32>
    %5 = tpu.matmul %4, %0, %cst {dimension_numbers = #tpu.dot_dimension_numbers<[1], [0], [0], [1], [0, 0, 1, 1], [], []>} : vector<8x16xf32>, vector<16x128xf32>, vector<8x128xf32> -> vector<8x128xf32>
    %6 = vector.broadcast %1 : vector<1x128xf32> to vector<8x128xf32>
    %7 = arith.addf %5, %6 : vector<8x128xf32>
    %cst_8 = arith.constant 0.000000e+00 : f32
    %8 = vector.broadcast %cst_8 : f32 to vector<8x128xf32>
    %9 = arith.maximumf %7, %8 : vector<8x128xf32>
    %10 = arith.addf %9, %2 : vector<8x128xf32>
    %c0_9 = arith.constant 0 : index
    %c0_10 = arith.constant 0 : index
    %c0_11 = arith.constant 0 : index
    %11 = vector.load %arg6[%c0_9, %c0_10, %c0_11] : memref<8x4x128xf32, #tpu.memory_space<vmem>>, vector<8x1x128xf32>
    %12 = vector.shape_cast %11 : vector<8x1x128xf32> to vector<8x128xf32>
    %13 = vector.shape_cast %10 : vector<8x128xf32> to vector<8x1x128xf32>
    tpu.vector_store %arg6[%c0_9, %c0_10, %c0_11], %13 {strides = array<i32>} : memref<8x4x128xf32, #tpu.memory_space<vmem>>, vector<8x1x128xf32>,
    %c0_12 = arith.constant 0 : index
    %c1 = arith.constant 1 : index
    %c0_13 = arith.constant 0 : index
    %14 = vector.load %arg2[%c0_12, %c1, %c0_13] : memref<8x4x16xf32, #tpu.memory_space<vmem>>, vector<8x1x16xf32>
    %15 = vector.shape_cast %14 : vector<8x1x16xf32> to vector<8x16xf32>
    %cst_14 = arith.constant dense<0.000000e+00> : vector<8x128xf32>
    %16 = tpu.matmul %15, %0, %cst_14 {dimension_numbers = #tpu.dot_dimension_numbers<[1], [0], [0], [1], [0, 0, 1, 1], [], []>} : vector<8x16xf32>, vector<16x128xf32>, vector<8x128xf32> -> vector<8x128xf32>
    %17 = vector.broadcast %1 : vector<1x128xf32> to vector<8x128xf32>
    %18 = arith.addf %16, %17 : vector<8x128xf32>
    %cst_15 = arith.constant 0.000000e+00 : f32
    %19 = vector.broadcast %cst_15 : f32 to vector<8x128xf32>
    %20 = arith.maximumf %18, %19 : vector<8x128xf32>
    %21 = arith.addf %20, %2 : vector<8x128xf32>
    %c0_16 = arith.constant 0 : index
    %c1_17 = arith.constant 1 : index
    %c0_18 = arith.constant 0 : index
    %22 = vector.load %arg6[%c0_16, %c1_17, %c0_18] : memref<8x4x128xf32, #tpu.memory_space<vmem>>, vector<8x1x128xf32>
    %23 = vector.shape_cast %22 : vector<8x1x128xf32> to vector<8x128xf32>
    %24 = vector.shape_cast %21 : vector<8x128xf32> to vector<8x1x128xf32>
    tpu.vector_store %arg6[%c0_16, %c1_17, %c0_18], %24 {strides = array<i32>} : memref<8x4x128xf32, #tpu.memory_space<vmem>>, vector<8x1x128xf32>,
    %c0_19 = arith.constant 0 : index
    %c2 = arith.constant 2 : index
    %c0_20 = arith.constant 0 : index
    %25 = vector.load %arg2[%c0_19, %c2, %c0_20] : memref<8x4x16xf32, #tpu.memory_space<vmem>>, vector<8x1x16xf32>
    %26 = vector.shape_cast %25 : vector<8x1x16xf32> to vector<8x16xf32>
    %cst_21 = arith.constant dense<0.000000e+00> : vector<8x128xf32>
    %27 = tpu.matmul %26, %0, %cst_21 {dimension_numbers = #tpu.dot_dimension_numbers<[1], [0], [0], [1], [0, 0, 1, 1], [], []>} : vector<8x16xf32>, vector<16x128xf32>, vector<8x128xf32> -> vector<8x128xf32>
    %28 = vector.broadcast %1 : vector<1x128xf32> to vector<8x128xf32>
    %29 = arith.addf %27, %28 : vector<8x128xf32>
    %cst_22 = arith.constant 0.000000e+00 : f32
    %30 = vector.broadcast %cst_22 : f32 to vector<8x128xf32>
    %31 = arith.maximumf %29, %30 : vector<8x128xf32>
    %32 = arith.addf %31, %2 : vector<8x128xf32>
    %c0_23 = arith.constant 0 : index
    %c2_24 = arith.constant 2 : index
    %c0_25 = arith.constant 0 : index
    %33 = vector.load %arg6[%c0_23, %c2_24, %c0_25] : memref<8x4x128xf32, #tpu.memory_space<vmem>>, vector<8x1x128xf32>
    %34 = vector.shape_cast %33 : vector<8x1x128xf32> to vector<8x128xf32>
    %35 = vector.shape_cast %32 : vector<8x128xf32> to vector<8x1x128xf32>
    tpu.vector_store %arg6[%c0_23, %c2_24, %c0_25], %35 {strides = array<i32>} : memref<8x4x128xf32, #tpu.memory_space<vmem>>, vector<8x1x128xf32>,
    %c0_26 = arith.constant 0 : index
    %c3 = arith.constant 3 : index
    %c0_27 = arith.constant 0 : index
    %36 = vector.load %arg2[%c0_26, %c3, %c0_27] : memref<8x4x16xf32, #tpu.memory_space<vmem>>, vector<8x1x16xf32>
    %37 = vector.shape_cast %36 : vector<8x1x16xf32> to vector<8x16xf32>
    %cst_28 = arith.constant dense<0.000000e+00> : vector<8x128xf32>
    %38 = tpu.matmul %37, %0, %cst_28 {dimension_numbers = #tpu.dot_dimension_numbers<[1], [0], [0], [1], [0, 0, 1, 1], [], []>} : vector<8x16xf32>, vector<16x128xf32>, vector<8x128xf32> -> vector<8x128xf32>
    %39 = vector.broadcast %1 : vector<1x128xf32> to vector<8x128xf32>
    %40 = arith.addf %38, %39 : vector<8x128xf32>
    %cst_29 = arith.constant 0.000000e+00 : f32
    %41 = vector.broadcast %cst_29 : f32 to vector<8x128xf32>
    %42 = arith.maximumf %40, %41 : vector<8x128xf32>
    %43 = arith.addf %42, %2 : vector<8x128xf32>
    %c0_30 = arith.constant 0 : index
    %c3_31 = arith.constant 3 : index
    %c0_32 = arith.constant 0 : index
    %44 = vector.load %arg6[%c0_30, %c3_31, %c0_32] : memref<8x4x128xf32, #tpu.memory_space<vmem>>, vector<8x1x128xf32>
    %45 = vector.shape_cast %44 : vector<8x1x128xf32> to vector<8x128xf32>
    %46 = vector.shape_cast %43 : vector<8x128xf32> to vector<8x1x128xf32>
    tpu.vector_store %arg6[%c0_30, %c3_31, %c0_32], %46 {strides = array<i32>} : memref<8x4x128xf32, #tpu.memory_space<vmem>>, vector<8x1x128xf32>,
    return
  }
  func.func @transform_0(%arg0: i32, %arg1: i32) -> (i32, i32, i32) {
    %c0_i32 = arith.constant 0 : i32
    %c0_i32_0 = arith.constant 0 : i32
    %c0_i32_1 = arith.constant 0 : i32
    return %arg1, %c0_i32, %c0_i32_0 : i32, i32, i32
  }
  func.func @transform_1(%arg0: i32, %arg1: i32) -> (i32, i32) {
    %c0_i32 = arith.constant 0 : i32
    %c0_i32_0 = arith.constant 0 : i32
    return %c0_i32, %arg0 : i32, i32
  }
  func.func @transform_2(%arg0: i32, %arg1: i32) -> (i32, i32) {
    %c0_i32 = arith.constant 0 : i32
    %c0_i32_0 = arith.constant 0 : i32
    return %c0_i32, %arg0 : i32, i32
  }
  func.func @transform_3(%arg0: i32, %arg1: i32) -> (i32, i32) {
    %c0_i32 = arith.constant 0 : i32
    return %arg1, %arg0 : i32, i32
  }
  func.func @transform_4(%arg0: i32, %arg1: i32) -> (i32, i32, i32) {
    %c0_i32 = arith.constant 0 : i32
    %c0_i32_0 = arith.constant 0 : i32
    return %arg1, %c0_i32, %arg0 : i32, i32, i32
  }
}

</mosaic_0001>

<llo_original>
// kernel: positional_encoding_forward.1
$region0: #{positional_encoding_forward.1}
  #allocation0 [shape = 'u32[]', space=smem, size = 0x4, offset = 0x4, fixed_abs, tag = 'smem constant byte address 0x4 - core index']
  #allocation1 [shape = 'u32[144,128]{1,0:T(1,128)}', space=vmem, size = 0x12000, scoped, tag = 'internal scratch']
  %s0 = inlined_call_operand.vmem [shape: f32[12,4,16], index: 0, kind: input, shape index: {}]
  %s1 = inlined_call_operand.vmem [shape: f32[16,128], index: 1, kind: input, shape index: {}]
  %s2 = inlined_call_operand.vmem [shape: f32[1,128], index: 2, kind: input, shape index: {}]
  %s3 = inlined_call_operand.vmem [shape: f32[12,128], index: 3, kind: input, shape index: {}]
  %s4 = inlined_call_operand.hbm [shape: f32[12,4,128], index: 4, kind: output, shape index: {}]
  %s5 = sld [smem:[#allocation0]]
  $region49: #{positional_encoding_forward.1} parent=0
    _
  %s7 = ssub.s32 1, %s5
  %s8 = scalar_select 0, %s7, %s5
  $region1: #{positional_encoding_forward.1} parent=0
    #allocation2 [shape = 'u8[32768]{0}', space=vmem, size = 0x8000, scoped, tag = 'output window, operand 0']
    #allocation3 [shape = 's32[2]{0}', space=sflag, size = 0x8, scoped, tag = 'scoped memory for positional_encoding_forward.1']
    %9 = vsyncpa [#allocation3], 0
    %s10 = scalar_lea.sflag [#allocation3], 1
    %11 = vsyncpa %s10, 0
    loop: start=0, step=1, limit=4
    $region2: #{positional_encoding_forward.1} parent=1 // loop_pre_header
      _
    $region3: #{positional_encoding_forward.1} parent=1 // loop_header
      %s13 = sphi 0, %s17
      %p14 = scmp.ge.s32.totalorder %s13, 4
      %s20 = sphi 0, %s32
      %s21 = sphi 0, %s28
      %s22 = sphi 0, %s20
      %s23 = sphi 0, %s21
      %s24 = sphi 0, %s22
      %s25 = sphi 0, %s23
      %s35 = sphi 0, %s37
      %s38 = sphi 0, %s35
      %s39 = sphi 0, %s38
      %s55 = sphi 0, %s39
      %s61 = sphi 0, %s63
      %s64 = sphi 0, %s61
      %s65 = sphi 0, %s64
      %s81 = sphi 0, %s65
      %s87 = sphi 0, %s89
      %s90 = sphi 0, %s87
      %s91 = sphi 0, %s90
      %s107 = sphi 0, %s91
      %s115 = sphi 0, %s117
      %s118 = sphi 0, %s115
      %s119 = sphi 0, %s118
      %s135 = sphi 0, %s119
      %s143 = sphi 0, %s145
      %s146 = sphi 0, %s143
      %s147 = sphi 0, %s146
      %s163 = sphi 0, %s147
    $region4: #{positional_encoding_forward.1} parent=1 // loop_header_branch
      %16 = sbr.rel (%p14) target = $region8
    $region5: #{positional_encoding_forward.1} parent=1 // loop_body
      %s18 = ssub.s32 %s13, 1
      %s19 = ssub.s32 %s13, 2
      %s26 = sadd.s32 1, %s21
      %p27 = scmp.ge.s32.totalorder %s26, 2
      %s28 = scalar_select %p27, 0, %s26
      %s29 = sadd.s32 1, %s20
      %s30 = scalar_select %p27, %s29, %s20
      %p31 = scmp.ge.s32.totalorder %s30, 1
      %s32 = scalar_select %p31, 0, %s30
      %s33 = ssub.s32 %s21, %s28
      %p34 = scmp.eq.s32.totalorder %s33, 0
      %s36 = sadd.s32 %s35, 1
      %s37 = scalar_select %p34, %s35, %s36
      %p40 = pneg %p34
      %p41 = scmp.eq.s32.totalorder %s13, 1
      %p42 = por %p40, %p41
      %p43 = scmp.ne.s32.totalorder %s35, %s38
      %p44 = scmp.eq.s32.totalorder %s13, 0
      %p45 = por %p43, %p44
      %p46 = scmp.ne.s32.totalorder %s35, %s38
      %p47 = scmp.eq.s32.totalorder %s18, 1
      %p48 = por %p46, %p47
      %p49 = scmp.ne.s32.totalorder %s38, %s39
      %p50 = scmp.eq.s32.totalorder %s18, 0
      %p51 = por %p49, %p50
      %p52 = scmp.ne.s32.totalorder %s38, %s39
      %p53 = scmp.eq.s32.totalorder %s19, 1
      %p54 = por %p52, %p53
      %p56 = scmp.ne.s32.totalorder %s39, %s55
      %p57 = scmp.eq.s32.totalorder %s19, 0
      %p58 = por %p56, %p57
      %s59 = ssub.s32 %s20, %s32
      %p60 = scmp.eq.s32.totalorder %s59, 0
      %s62 = sadd.s32 %s61, 1
      %s63 = scalar_select %p60, %s61, %s62
      %p66 = pneg %p60
      %p67 = scmp.eq.s32.totalorder %s13, 1
      %p68 = por %p66, %p67
      %p69 = scmp.ne.s32.totalorder %s61, %s64
      %p70 = scmp.eq.s32.totalorder %s13, 0
      %p71 = por %p69, %p70
      %p72 = scmp.ne.s32.totalorder %s61, %s64
      %p73 = scmp.eq.s32.totalorder %s18, 1
      %p74 = por %p72, %p73
      %p75 = scmp.ne.s32.totalorder %s64, %s65
      %p76 = scmp.eq.s32.totalorder %s18, 0
      %p77 = por %p75, %p76
      %p78 = scmp.ne.s32.totalorder %s64, %s65
      %p79 = scmp.eq.s32.totalorder %s19, 1
      %p80 = por %p78, %p79
      %p82 = scmp.ne.s32.totalorder %s65, %s81
      %p83 = scmp.eq.s32.totalorder %s19, 0
      %p84 = por %p82, %p83
      %s85 = ssub.s32 %s20, %s32
      %p86 = scmp.eq.s32.totalorder %s85, 0
      %s88 = sadd.s32 %s87, 1
      %s89 = scalar_select %p86, %s87, %s88
      %p92 = pneg %p86
      %p93 = scmp.eq.s32.totalorder %s13, 1
      %p94 = por %p92, %p93
      %p95 = scmp.ne.s32.totalorder %s87, %s90
      %p96 = scmp.eq.s32.totalorder %s13, 0
      %p97 = por %p95, %p96
      %p98 = scmp.ne.s32.totalorder %s87, %s90
      %p99 = scmp.eq.s32.totalorder %s18, 1
      %p100 = por %p98, %p99
      %p101 = scmp.ne.s32.totalorder %s90, %s91
      %p102 = scmp.eq.s32.totalorder %s18, 0
      %p103 = por %p101, %p102
      %p104 = scmp.ne.s32.totalorder %s90, %s91
      %p105 = scmp.eq.s32.totalorder %s19, 1
      %p106 = por %p104, %p105
      %p108 = scmp.ne.s32.totalorder %s91, %s107
      %p109 = scmp.eq.s32.totalorder %s19, 0
      %p110 = por %p108, %p109
      %s111 = ssub.s32 %s21, %s28
      %s112 = ssub.s32 %s20, %s32
      %s113 = sor.u32 %s111, %s112
      %p114 = scmp.eq.s32.totalorder %s113, 0
      %s116 = sadd.s32 %s115, 1
      %s117 = scalar_select %p114, %s115, %s116
      %p120 = pneg %p114
      %p121 = scmp.eq.s32.totalorder %s13, 1
      %p122 = por %p120, %p121
      %p123 = scmp.ne.s32.totalorder %s115, %s118
      %p124 = scmp.eq.s32.totalorder %s13, 0
      %p125 = por %p123, %p124
      %p126 = scmp.ne.s32.totalorder %s115, %s118
      %p127 = scmp.eq.s32.totalorder %s18, 1
      %p128 = por %p126, %p127
      %p129 = scmp.ne.s32.totalorder %s118, %s119
      %p130 = scmp.eq.s32.totalorder %s18, 0
      %p131 = por %p129, %p130
      %p132 = scmp.ne.s32.totalorder %s118, %s119
      %p133 = scmp.eq.s32.totalorder %s19, 1
      %p134 = por %p132, %p133
      %p136 = scmp.ne.s32.totalorder %s119, %s135
      %p137 = scmp.eq.s32.totalorder %s19, 0
      %p138 = por %p136, %p137
      %s139 = ssub.s32 %s21, %s28
      %s140 = ssub.s32 %s20, %s32
      %s141 = sor.u32 %s139, %s140
      %p142 = scmp.eq.s32.totalorder %s141, 0
      %s144 = sadd.s32 %s143, 1
      %s145 = scalar_select %p142, %s143, %s144
      %p148 = pneg %p142
      %p149 = scmp.eq.s32.totalorder %s13, 1
      %p150 = por %p148, %p149
      %p151 = scmp.ne.s32.totalorder %s143, %s146
      %p152 = scmp.eq.s32.totalorder %s13, 0
      %p153 = por %p151, %p152
      %p154 = scmp.ne.s32.totalorder %s143, %s146
      %p155 = scmp.eq.s32.totalorder %s18, 1
      %p156 = por %p154, %p155
      %p157 = scmp.ne.s32.totalorder %s146, %s147
      %p158 = scmp.eq.s32.totalorder %s18, 0
      %p159 = por %p157, %p158
      %p160 = scmp.ne.s32.totalorder %s146, %s147
      %p161 = scmp.eq.s32.totalorder %s19, 1
      %p162 = por %p160, %p161
      %p164 = scmp.ne.s32.totalorder %s147, %s163
      %p165 = scmp.eq.s32.totalorder %s19, 0
      %p166 = por %p164, %p165
      %p167 = scmp.le.s32.totalorder 1, %s13
      %p168 = scmp.lt.s32.totalorder %s13, 3
      %p169 = pnand %p167, %p168
      %p170 = pneg %p169
      // Predicated region
      $region9: #{positional_encoding_forward.1} parent=5 // pred_check
        _
      $region10: #{positional_encoding_forward.1} parent=5 // pred_check_branch
        %172 = sbr.rel (%p169) target = $region12
      $region11: #{positional_encoding_forward.1} parent=5 // pred_region
        %s173 = ssub.s32 %s13, 1
        // Predicated region
        $region13: #{positional_encoding_forward.1} parent=11 // pred_check
          %p174 = pneg %p77
        $region14: #{positional_encoding_forward.1} parent=11 // pred_check_branch
          %176 = sbr.rel (%p174) target = $region16
        $region15: #{positional_encoding_forward.1} parent=11 // pred_region
          %p177 = scmp.lt.s32.totalorder %s22, 0
          %s178 = scalar_select %p177, %s22, 0
          %s179 = smul.addr %s178, 8
          %s180 = scalar_lea.vmem %s1, %s179
        $region16: #{positional_encoding_forward.1} parent=11 // pred_fallthru
          _
        // Predicated region
        $region17: #{positional_encoding_forward.1} parent=11 // pred_check
          %p181 = pneg %p103
        $region18: #{positional_encoding_forward.1} parent=11 // pred_check_branch
          %183 = sbr.rel (%p181) target = $region20
        $region19: #{positional_encoding_forward.1} parent=11 // pred_region
          %p184 = scmp.lt.s32.totalorder %s22, 0
          %s185 = scalar_select %p184, %s22, 0
          %s186 = scalar_lea.vmem %s2, %s185
        $region20: #{positional_encoding_forward.1} parent=11 // pred_fallthru
          _
      $region12: #{positional_encoding_forward.1} parent=5 // pred_fallthru
        _
      %p187 = scmp.lt.s32.totalorder %s13, 2
      // Predicated region
      $region21: #{positional_encoding_forward.1} parent=5 // pred_check
        %p188 = pneg %p187
      $region22: #{positional_encoding_forward.1} parent=5 // pred_check_branch
        %190 = sbr.rel (%p188) target = $region24
      $region23: #{positional_encoding_forward.1} parent=5 // pred_region
        // Predicated region
        $region25: #{positional_encoding_forward.1} parent=23 // pred_check
          %p191 = pneg %p45
        $region26: #{positional_encoding_forward.1} parent=23 // pred_check_branch
          %193 = sbr.rel (%p191) target = $region28
        $region27: #{positional_encoding_forward.1} parent=23 // pred_region
          %s194 = smul.u32 8, %s21
          %s195 = ssub.s32 12, %s194
          %p196 = scmp.lt.s32.totalorder %s195, 8
          %s197 = scalar_select %p196, %s195, 8
          %s198 = smul.u32 64, %s197
          %p199 = scmp.lt.s32.totalorder %s194, 11
          %s200 = scalar_select %p199, %s194, 11
          %s201 = smul.addr %s200, 4
          %s202 = scalar_lea.vmem %s0, %s201
          %s203 = smul.u32 8, %s21
          %s204 = ssub.s32 12, %s203
          %p205 = scmp.lt.s32.totalorder %s204, 8
          %s206 = scalar_select %p205, %s204, 8
          %s207 = smul.u32 64, %s206
        $region28: #{positional_encoding_forward.1} parent=23 // pred_fallthru
          _
        // Predicated region
        $region29: #{positional_encoding_forward.1} parent=23 // pred_check
          %p208 = pneg %p125
        $region30: #{positional_encoding_forward.1} parent=23 // pred_check_branch
          %210 = sbr.rel (%p208) target = $region32
        $region31: #{positional_encoding_forward.1} parent=23 // pred_region
          %p211 = scmp.lt.s32.totalorder %s21, 1
          %s212 = scalar_select %p211, %s21, 1
          %p213 = scmp.lt.s32.totalorder %s20, 0
          %s214 = scalar_select %p213, %s20, 0
          %s215 = sadd.s32 %s214, %s212
          %s216 = smul.addr %s215, 8
          %s217 = scalar_lea.vmem %s3, %s216
        $region32: #{positional_encoding_forward.1} parent=23 // pred_fallthru
          _
      $region24: #{positional_encoding_forward.1} parent=5 // pred_fallthru
        _
      %p218 = scmp.le.s32.totalorder 1, %s13
      %p219 = scmp.lt.s32.totalorder %s13, 3
      %p220 = pnand %p218, %p219
      %p221 = pneg %p220
      // Predicated region
      $region33: #{positional_encoding_forward.1} parent=5 // pred_check
        _
      $region34: #{positional_encoding_forward.1} parent=5 // pred_check_branch
        %223 = sbr.rel (%p220) target = $region36
      $region35: #{positional_encoding_forward.1} parent=5 // pred_region
        %s224 = ssub.s32 %s13, 1
        %s225 = smul.u32 8, %s23
        %s226 = ssub.s32 12, %s225
        %p227 = scmp.lt.s32.totalorder %s226, 8
        %s228 = scalar_select %p227, %s226, 8
        %s229 = smul.u32 64, %s228
        %p230 = scmp.lt.s32.totalorder %s225, 11
        %s231 = scalar_select %p230, %s225, 11
        %s232 = smul.addr %s231, 4
        %s233 = scalar_lea.vmem %s0, %s232
        %p234 = pneg %p51
        %p235 = pneg %p48
        %p236 = scmp.lt.s32.totalorder %s22, 0
        %s237 = scalar_select %p236, %s22, 0
        %s238 = smul.addr %s237, 8
        %s239 = scalar_lea.vmem %s1, %s238
        %p240 = pneg %p77
        %p241 = pneg %p74
        %p242 = scmp.lt.s32.totalorder %s22, 0
        %s243 = scalar_select %p242, %s22, 0
        %s244 = scalar_lea.vmem %s2, %s243
        %p245 = pneg %p103
        %p246 = pneg %p100
        %p247 = scmp.lt.s32.totalorder %s23, 1
        %s248 = scalar_select %p247, %s23, 1
        %p249 = scmp.lt.s32.totalorder %s22, 0
        %s250 = scalar_select %p249, %s22, 0
        %s251 = sadd.s32 %s250, %s248
        %s252 = smul.addr %s251, 8
        %s253 = scalar_lea.vmem %s3, %s252
        %p254 = pneg %p131
        %p255 = pneg %p128
        %p256 = pneg %p159
        %p257 = pneg %p156
        %s258 = sand.u32 %s146, 1
        %s259 = scalar_lea.sflag [#allocation3], %s258
        %s260 = sand.u32 %s146, 1
        %s261 = smul.addr %s260, 32
        %s262 = scalar_lea.vmem [#allocation2], %s261
        %s263 = smul.u32 8, %s23
        %s264 = ssub.s32 12, %s263
        %p265 = scmp.lt.s32.totalorder %s264, 8
        %s266 = scalar_select %p265, %s264, 8
        %s267 = smul.u32 64, %s266
        %p268 = scmp.lt.s32.totalorder %s263, 11
        %s269 = scalar_select %p268, %s263, 11
        %s270 = smul.addr %s269, 4
        %s271 = scalar_lea.vmem %s0, %s270
        %s272 = smul.u32 8, %s23
        %s273 = ssub.s32 12, %s272
        %p274 = scmp.lt.s32.totalorder %s273, 8
        %s275 = scalar_select %p274, %s273, 8
        %s276 = smul.u32 64, %s275
        %p277 = scmp.lt.s32.totalorder %s22, 0
        %s278 = scalar_select %p277, %s22, 0
        %s279 = smul.addr %s278, 8
        %s280 = scalar_lea.vmem %s1, %s279
        %p281 = scmp.lt.s32.totalorder %s22, 0
        %s282 = scalar_select %p281, %s22, 0
        %s283 = scalar_lea.vmem %s2, %s282
        %p284 = scmp.lt.s32.totalorder %s23, 1
        %s285 = scalar_select %p284, %s23, 1
        %p286 = scmp.lt.s32.totalorder %s22, 0
        %s287 = scalar_select %p286, %s22, 0
        %s288 = sadd.s32 %s287, %s285
        %s289 = smul.addr %s288, 8
        %s290 = scalar_lea.vmem %s3, %s289
        %s291 = smul.u32 8, %s23
        %s292 = ssub.s32 12, %s291
        %p293 = scmp.lt.s32.totalorder %s292, 8
        %s294 = scalar_select %p293, %s292, 8
        %s295 = smul.u32 64, %s294
        %v296 = vld [vmem:[%s280] sm:$0xff]
        %v297 = vld [vmem:[%s280 + $0x8] sm:$0xff]
        %v298 = vld [vmem:[%s283] sm:$0x1]
        %v299 = vld [vmem:[%s290] sm:$0xff]
        %v300 = vld [vmem:[%s271] sm:$0x1]
        %v301 = vld [vmem:[%s271 + $0x4] sm:$0x1]
        %v302 = vld [vmem:[%s271 + $0x8] sm:$0x1]
        %v303 = vld [vmem:[%s271 + $0xc] sm:$0x1]
        %v304 = vld [vmem:[%s271 + $0x10] sm:$0x1]
        %v305 = vld [vmem:[%s271 + $0x14] sm:$0x1]
        %v306 = vld [vmem:[%s271 + $0x18] sm:$0x1]
        %v307 = vld [vmem:[%s271 + $0x1c] sm:$0x1]
        %v309 = vlaneseq
        %v310 = vshrl.u32 %v309, 7
        %v311 = vsub.s32 0, %v310
        %v312 = vrot.slane %v298, %v311
        %v322 = vrot.slane %v301, 7
        %vm323 = vcmask 1041409
        %v324 = vsel %vm323, %v322, %v300
        %v325 = vrot.slane %v302, 6
        %vm326 = vcmask 1042434
        %v327 = vsel %vm326, %v325, %v324
        %v328 = vrot.slane %v303, 5
        %vm329 = vcmask 1043459
        %v330 = vsel %vm329, %v328, %v327
        %v331 = vrot.slane %v304, 4
        %vm332 = vcmask 1044484
        %v333 = vsel %vm332, %v331, %v330
        %v334 = vrot.slane %v305, 3
        %vm335 = vcmask 1045509
        %v336 = vsel %vm335, %v334, %v333
        %v337 = vrot.slane %v306, 2
        %vm338 = vcmask 1046534
        %v339 = vsel %vm338, %v337, %v336
        %v340 = vrot.slane %v307, 1
        %vm341 = vcmask 1047559
        %v342 = vsel %vm341, %v340, %v339
        %vm343 = vcmask 130048
        %v344 = vsel %vm343, %v342, 0
        %346 = vmatprep.subr.mxu0 0.0
        %347 = vmatpush1.msra.mxu0 0.0
        %348 = vmatprep.subr.mxu0 0.0
        %349 = vmatpush1.msra.mxu0 0.0
        %350 = vmatprep.subr.mxu0 0.0
        %351 = vmatpush1.msra.mxu0 0.0
        %352 = vmatprep.subr.mxu0 0.0
        %353 = vmatpush1.msra.mxu0 0.0
        %354 = vmatprep.subr.mxu0 0.0
        %355 = vmatpush1.msra.mxu0 0.0
        %356 = vmatprep.subr.mxu0 0.0
        %357 = vmatpush1.msra.mxu0 0.0
        %358 = vmatprep.subr.mxu0 0.0
        %359 = vmatpush1.msra.mxu0 0.0
        %360 = vmatprep.subr.mxu0 0.0
        %361 = vmatpush1.msra.mxu0 0.0
        %362 = vmatprep.subr.mxu0 0.0
        %363 = vmatpush1.msra.mxu0 0.0
        %364 = vmatprep.subr.mxu0 0.0
        %365 = vmatpush1.msra.mxu0 0.0
        %366 = vmatprep.subr.mxu0 0.0
        %367 = vmatpush1.msra.mxu0 0.0
        %368 = vmatprep.subr.mxu0 0.0
        %369 = vmatpush1.msra.mxu0 0.0
        %370 = vmatprep.subr.mxu0 0.0
        %371 = vmatpush1.msra.mxu0 0.0
        %372 = vmatprep.subr.mxu0 0.0
        %373 = vmatpush1.msra.mxu0 0.0
        %374 = vmatprep.subr.mxu0 0.0
        %375 = vmatpush1.msra.mxu0 %v297
        %376 = vmatprep.subr.mxu0 0.0
        %377 = vmatpush1.msra.mxu0 %v296
        %378 = vmatprep.subr.mxu0 0.0
        %379 = vmatpush2.msra.mxu0 0.0
        %380 = vmatprep.subr.mxu0 0.0
        %381 = vmatpush2.msra.mxu0 0.0
        %382 = vmatprep.subr.mxu0 0.0
        %383 = vmatpush2.msra.mxu0 0.0
        %384 = vmatprep.subr.mxu0 0.0
        %385 = vmatpush2.msra.mxu0 0.0
        %386 = vmatprep.subr.mxu0 0.0
        %387 = vmatpush2.msra.mxu0 0.0
        %388 = vmatprep.subr.mxu0 0.0
        %389 = vmatpush2.msra.mxu0 0.0
        %390 = vmatprep.subr.mxu0 0.0
        %391 = vmatpush2.msra.mxu0 0.0
        %392 = vmatprep.subr.mxu0 0.0
        %393 = vmatpush2.msra.mxu0 0.0
        %394 = vmatprep.subr.mxu0 0.0
        %395 = vmatpush2.msra.mxu0 0.0
        %396 = vmatprep.subr.mxu0 0.0
        %397 = vmatpush2.msra.mxu0 0.0
        %398 = vmatprep.subr.mxu0 0.0
        %399 = vmatpush2.msra.mxu0 0.0
        %400 = vmatprep.subr.mxu0 0.0
        %401 = vmatpush2.msra.mxu0 0.0
        %402 = vmatprep.subr.mxu0 0.0
        %403 = vmatpush2.msra.mxu0 0.0
        %404 = vmatprep.subr.mxu0 0.0
        %405 = vmatpush2.msra.mxu0 0.0
        %406 = vmatprep.subr.mxu0 0.0
        %407 = vmatpush2.msra.mxu0 0.0
        %408 = vmatprep.subr.mxu0 0.0
        %409 = vmatpush2.msra.mxu0 0.0
        %410 = vmatprep.mubr.f32.mxu0 0.0
        %411 = vmatmul.mubr.f32.gmra.mxu0 %v344
        %v412 = vpop.f32.mrf.mxu0
        %v413 = vadd.f32 %v312, %v412
        %v414 = vpop.f32.mrf.mxu0
        %415 = vdwg.mxu0
        %v416 = vmax.f32 %v413, 0.0
        %v417 = vadd.f32 %v416, %v299
        %v419 = vcombine.high %v417, %v417
        %v421 = vunpack.c.l.s4 1966171168
        %v422 = vunpack.c.0.s8 %v421
        %v423 = vlaneseq
        %v424 = vshrl.u32 %v423, 7
        %v425 = vsub.s32 %v422, %v424
        %v426 = vrot.slane %v417, %v425
        %v428 = vunpack.c.l.s4 1966171168
        %v429 = vunpack.c.0.s8 %v428
        %v430 = vlaneseq
        %v431 = vshrl.u32 %v430, 7
        %v432 = vsub.s32 %v429, %v431
        %v433 = vrot.slane %v419, %v432
        %v434 = vcombine.high %v426, %v426
        %v435 = vcombine.high %v433, %v433
        %v437 = vunpack.c.l.s4 1966171168
        %v438 = vunpack.c.0.s8 %v437
        %v439 = vlaneseq
        %v440 = vshrl.u32 %v439, 7
        %v441 = vsub.s32 %v438, %v440
        %v442 = vrot.slane %v426, %v441
        %v444 = vunpack.c.l.s4 1966171168
        %v445 = vunpack.c.0.s8 %v444
        %v446 = vlaneseq
        %v447 = vshrl.u32 %v446, 7
        %v448 = vsub.s32 %v445, %v447
        %v449 = vrot.slane %v433, %v448
        %v451 = vunpack.c.l.s4 1966171168
        %v452 = vunpack.c.0.s8 %v451
        %v453 = vlaneseq
        %v454 = vshrl.u32 %v453, 7
        %v455 = vsub.s32 %v452, %v454
        %v456 = vrot.slane %v434, %v455
        %v458 = vunpack.c.l.s4 1966171168
        %v459 = vunpack.c.0.s8 %v458
        %v460 = vlaneseq
        %v461 = vshrl.u32 %v460, 7
        %v462 = vsub.s32 %v459, %v461
        %v463 = vrot.slane %v435, %v462
        %v464 = vcombine.high %v442, %v442
        %v465 = vcombine.high %v449, %v449
        %v466 = vcombine.high %v456, %v456
        %v467 = vcombine.high %v463, %v463
        %476 = vst [vmem:[%s262] sm:$0x1] %v442
        %477 = vst [vmem:[%s262 + $0x4] sm:$0x1] %v456
        %478 = vst [vmem:[%s262 + $0x8] sm:$0x1] %v464
        %479 = vst [vmem:[%s262 + $0xc] sm:$0x1] %v466
        %480 = vst [vmem:[%s262 + $0x10] sm:$0x1] %v449
        %481 = vst [vmem:[%s262 + $0x14] sm:$0x1] %v463
        %482 = vst [vmem:[%s262 + $0x18] sm:$0x1] %v465
        %483 = vst [vmem:[%s262 + $0x1c] sm:$0x1] %v467
        %v484 = vld [vmem:[%s271 + $0x1] sm:$0x1]
        %v485 = vld [vmem:[%s271 + $0x5] sm:$0x1]
        %v486 = vld [vmem:[%s271 + $0x9] sm:$0x1]
        %v487 = vld [vmem:[%s271 + $0xd] sm:$0x1]
        %v488 = vld [vmem:[%s271 + $0x11] sm:$0x1]
        %v489 = vld [vmem:[%s271 + $0x15] sm:$0x1]
        %v490 = vld [vmem:[%s271 + $0x19] sm:$0x1]
        %v491 = vld [vmem:[%s271 + $0x1d] sm:$0x1]
        %v500 = vrot.slane %v485, 7
        %v501 = vsel %vm323, %v500, %v484
        %v502 = vrot.slane %v486, 6
        %v503 = vsel %vm326, %v502, %v501
        %v504 = vrot.slane %v487, 5
        %v505 = vsel %vm329, %v504, %v503
        %v506 = vrot.slane %v488, 4
        %v507 = vsel %vm332, %v506, %v505
        %v508 = vrot.slane %v489, 3
        %v509 = vsel %vm335, %v508, %v507
        %v510 = vrot.slane %v490, 2
        %v511 = vsel %vm338, %v510, %v509
        %v512 = vrot.slane %v491, 1
        %v513 = vsel %vm341, %v512, %v511
        %v514 = vsel %vm343, %v513, 0
        %516 = vmatprep.subr.mxu0 0.0
        %517 = vmatpush1.msra.mxu0 0.0
        %518 = vmatprep.subr.mxu0 0.0
        %519 = vmatpush1.msra.mxu0 0.0
        %520 = vmatprep.subr.mxu0 0.0
        %521 = vmatpush1.msra.mxu0 0.0
        %522 = vmatprep.subr.mxu0 0.0
        %523 = vmatpush1.msra.mxu0 0.0
        %524 = vmatprep.subr.mxu0 0.0
        %525 = vmatpush1.msra.mxu0 0.0
        %526 = vmatprep.subr.mxu0 0.0
        %527 = vmatpush1.msra.mxu0 0.0
        %528 = vmatprep.subr.mxu0 0.0
        %529 = vmatpush1.msra.mxu0 0.0
        %530 = vmatprep.subr.mxu0 0.0
        %531 = vmatpush1.msra.mxu0 0.0
        %532 = vmatprep.subr.mxu0 0.0
        %533 = vmatpush1.msra.mxu0 0.0
        %534 = vmatprep.subr.mxu0 0.0
        %535 = vmatpush1.msra.mxu0 0.0
        %536 = vmatprep.subr.mxu0 0.0
        %537 = vmatpush1.msra.mxu0 0.0
        %538 = vmatprep.subr.mxu0 0.0
        %539 = vmatpush1.msra.mxu0 0.0
        %540 = vmatprep.subr.mxu0 0.0
        %541 = vmatpush1.msra.mxu0 0.0
        %542 = vmatprep.subr.mxu0 0.0
        %543 = vmatpush1.msra.mxu0 0.0
        %544 = vmatprep.subr.mxu0 0.0
        %545 = vmatpush1.msra.mxu0 %v297
        %546 = vmatprep.subr.mxu0 0.0
        %547 = vmatpush1.msra.mxu0 %v296
        %548 = vmatprep.subr.mxu0 0.0
        %549 = vmatpush2.msra.mxu0 0.0
        %550 = vmatprep.subr.mxu0 0.0
        %551 = vmatpush2.msra.mxu0 0.0
        %552 = vmatprep.subr.mxu0 0.0
        %553 = vmatpush2.msra.mxu0 0.0
        %554 = vmatprep.subr.mxu0 0.0
        %555 = vmatpush2.msra.mxu0 0.0
        %556 = vmatprep.subr.mxu0 0.0
        %557 = vmatpush2.msra.mxu0 0.0
        %558 = vmatprep.subr.mxu0 0.0
        %559 = vmatpush2.msra.mxu0 0.0
        %560 = vmatprep.subr.mxu0 0.0
        %561 = vmatpush2.msra.mxu0 0.0
        %562 = vmatprep.subr.mxu0 0.0
        %563 = vmatpush2.msra.mxu0 0.0
        %564 = vmatprep.subr.mxu0 0.0
        %565 = vmatpush2.msra.mxu0 0.0
        %566 = vmatprep.subr.mxu0 0.0
        %567 = vmatpush2.msra.mxu0 0.0
        %568 = vmatprep.subr.mxu0 0.0
        %569 = vmatpush2.msra.mxu0 0.0
        %570 = vmatprep.subr.mxu0 0.0
        %571 = vmatpush2.msra.mxu0 0.0
        %572 = vmatprep.subr.mxu0 0.0
        %573 = vmatpush2.msra.mxu0 0.0
        %574 = vmatprep.subr.mxu0 0.0
        %575 = vmatpush2.msra.mxu0 0.0
        %576 = vmatprep.subr.mxu0 0.0
        %577 = vmatpush2.msra.mxu0 0.0
        %578 = vmatprep.subr.mxu0 0.0
        %579 = vmatpush2.msra.mxu0 0.0
        %580 = vmatprep.mubr.f32.mxu0 0.0
        %581 = vmatmul.mubr.f32.gmra.mxu0 %v514
        %v582 = vpop.f32.mrf.mxu0
        %v583 = vadd.f32 %v312, %v582
        %v584 = vpop.f32.mrf.mxu0
        %585 = vdwg.mxu0
        %v586 = vmax.f32 %v583, 0.0
        %v587 = vadd.f32 %v586, %v299
        %v589 = vcombine.high %v587, %v587
        %v591 = vunpack.c.l.s4 1966171168
        %v592 = vunpack.c.0.s8 %v591
        %v593 = vlaneseq
        %v594 = vshrl.u32 %v593, 7
        %v595 = vsub.s32 %v592, %v594
        %v596 = vrot.slane %v587, %v595
        %v598 = vunpack.c.l.s4 1966171168
        %v599 = vunpack.c.0.s8 %v598
        %v600 = vlaneseq
        %v601 = vshrl.u32 %v600, 7
        %v602 = vsub.s32 %v599, %v601
        %v603 = vrot.slane %v589, %v602
        %v604 = vcombine.high %v596, %v596
        %v605 = vcombine.high %v603, %v603
        %v607 = vunpack.c.l.s4 1966171168
        %v608 = vunpack.c.0.s8 %v607
        %v609 = vlaneseq
        %v610 = vshrl.u32 %v609, 7
        %v611 = vsub.s32 %v608, %v610
        %v612 = vrot.slane %v596, %v611
        %v614 = vunpack.c.l.s4 1966171168
        %v615 = vunpack.c.0.s8 %v614
        %v616 = vlaneseq
        %v617 = vshrl.u32 %v616, 7
        %v618 = vsub.s32 %v615, %v617
        %v619 = vrot.slane %v603, %v618
        %v621 = vunpack.c.l.s4 1966171168
        %v622 = vunpack.c.0.s8 %v621
        %v623 = vlaneseq
        %v624 = vshrl.u32 %v623, 7
        %v625 = vsub.s32 %v622, %v624
        %v626 = vrot.slane %v604, %v625
        %v628 = vunpack.c.l.s4 1966171168
        %v629 = vunpack.c.0.s8 %v628
        %v630 = vlaneseq
        %v631 = vshrl.u32 %v630, 7
        %v632 = vsub.s32 %v629, %v631
        %v633 = vrot.slane %v605, %v632
        %v634 = vcombine.high %v612, %v612
        %v635 = vcombine.high %v619, %v619
        %v636 = vcombine.high %v626, %v626
        %v637 = vcombine.high %v633, %v633
        %646 = vst [vmem:[%s262 + $0x1] sm:$0x1] %v612
        %647 = vst [vmem:[%s262 + $0x5] sm:$0x1] %v626
        %648 = vst [vmem:[%s262 + $0x9] sm:$0x1] %v634
        %649 = vst [vmem:[%s262 + $0xd] sm:$0x1] %v636
        %650 = vst [vmem:[%s262 + $0x11] sm:$0x1] %v619
        %651 = vst [vmem:[%s262 + $0x15] sm:$0x1] %v633
        %652 = vst [vmem:[%s262 + $0x19] sm:$0x1] %v635
        %653 = vst [vmem:[%s262 + $0x1d] sm:$0x1] %v637
        %v654 = vld [vmem:[%s271 + $0x2] sm:$0x1]
        %v655 = vld [vmem:[%s271 + $0x6] sm:$0x1]
        %v656 = vld [vmem:[%s271 + $0xa] sm:$0x1]
        %v657 = vld [vmem:[%s271 + $0xe] sm:$0x1]
        %v658 = vld [vmem:[%s271 + $0x12] sm:$0x1]
        %v659 = vld [vmem:[%s271 + $0x16] sm:$0x1]
        %v660 = vld [vmem:[%s271 + $0x1a] sm:$0x1]
        %v661 = vld [vmem:[%s271 + $0x1e] sm:$0x1]
        %v670 = vrot.slane %v655, 7
        %v671 = vsel %vm323, %v670, %v654
        %v672 = vrot.slane %v656, 6
        %v673 = vsel %vm326, %v672, %v671
        %v674 = vrot.slane %v657, 5
        %v675 = vsel %vm329, %v674, %v673
        %v676 = vrot.slane %v658, 4
        %v677 = vsel %vm332, %v676, %v675
        %v678 = vrot.slane %v659, 3
        %v679 = vsel %vm335, %v678, %v677
        %v680 = vrot.slane %v660, 2
        %v681 = vsel %vm338, %v680, %v679
        %v682 = vrot.slane %v661, 1
        %v683 = vsel %vm341, %v682, %v681
        %v684 = vsel %vm343, %v683, 0
        %686 = vmatprep.subr.mxu0 0.0
        %687 = vmatpush1.msra.mxu0 0.0
        %688 = vmatprep.subr.mxu0 0.0
        %689 = vmatpush1.msra.mxu0 0.0
        %690 = vmatprep.subr.mxu0 0.0
        %691 = vmatpush1.msra.mxu0 0.0
        %692 = vmatprep.subr.mxu0 0.0
        %693 = vmatpush1.msra.mxu0 0.0
        %694 = vmatprep.subr.mxu0 0.0
        %695 = vmatpush1.msra.mxu0 0.0
        %696 = vmatprep.subr.mxu0 0.0
        %697 = vmatpush1.msra.mxu0 0.0
        %698 = vmatprep.subr.mxu0 0.0
        %699 = vmatpush1.msra.mxu0 0.0
        %700 = vmatprep.subr.mxu0 0.0
        %701 = vmatpush1.msra.mxu0 0.0
        %702 = vmatprep.subr.mxu0 0.0
        %703 = vmatpush1.msra.mxu0 0.0
        %704 = vmatprep.subr.mxu0 0.0
        %705 = vmatpush1.msra.mxu0 0.0
        %706 = vmatprep.subr.mxu0 0.0
        %707 = vmatpush1.msra.mxu0 0.0
        %708 = vmatprep.subr.mxu0 0.0
        %709 = vmatpush1.msra.mxu0 0.0
        %710 = vmatprep.subr.mxu0 0.0
        %711 = vmatpush1.msra.mxu0 0.0
        %712 = vmatprep.subr.mxu0 0.0
        %713 = vmatpush1.msra.mxu0 0.0
        %714 = vmatprep.subr.mxu0 0.0
        %715 = vmatpush1.msra.mxu0 %v297
        %716 = vmatprep.subr.mxu0 0.0
        %717 = vmatpush1.msra.mxu0 %v296
        %718 = vmatprep.subr.mxu0 0.0
        %719 = vmatpush2.msra.mxu0 0.0
        %720 = vmatprep.subr.mxu0 0.0
        %721 = vmatpush2.msra.mxu0 0.0
        %722 = vmatprep.subr.mxu0 0.0
        %723 = vmatpush2.msra.mxu0 0.0
        %724 = vmatprep.subr.mxu0 0.0
        %725 = vmatpush2.msra.mxu0 0.0
        %726 = vmatprep.subr.mxu0 0.0
        %727 = vmatpush2.msra.mxu0 0.0
        %728 = vmatprep.subr.mxu0 0.0
        %729 = vmatpush2.msra.mxu0 0.0
        %730 = vmatprep.subr.mxu0 0.0
        %731 = vmatpush2.msra.mxu0 0.0
        %732 = vmatprep.subr.mxu0 0.0
        %733 = vmatpush2.msra.mxu0 0.0
        %734 = vmatprep.subr.mxu0 0.0
        %735 = vmatpush2.msra.mxu0 0.0
        %736 = vmatprep.subr.mxu0 0.0
        %737 = vmatpush2.msra.mxu0 0.0
        %738 = vmatprep.subr.mxu0 0.0
        %739 = vmatpush2.msra.mxu0 0.0
        %740 = vmatprep.subr.mxu0 0.0
        %741 = vmatpush2.msra.mxu0 0.0
        %742 = vmatprep.subr.mxu0 0.0
        %743 = vmatpush2.msra.mxu0 0.0
        %744 = vmatprep.subr.mxu0 0.0
        %745 = vmatpush2.msra.mxu0 0.0
        %746 = vmatprep.subr.mxu0 0.0
        %747 = vmatpush2.msra.mxu0 0.0
        %748 = vmatprep.subr.mxu0 0.0
        %749 = vmatpush2.msra.mxu0 0.0
        %750 = vmatprep.mubr.f32.mxu0 0.0
        %751 = vmatmul.mubr.f32.gmra.mxu0 %v684
        %v752 = vpop.f32.mrf.mxu0
        %v753 = vadd.f32 %v312, %v752
        %v754 = vpop.f32.mrf.mxu0
        %755 = vdwg.mxu0
        %v756 = vmax.f32 %v753, 0.0
        %v757 = vadd.f32 %v756, %v299
        %v759 = vcombine.high %v757, %v757
        %v761 = vunpack.c.l.s4 1966171168
        %v762 = vunpack.c.0.s8 %v761
        %v763 = vlaneseq
        %v764 = vshrl.u32 %v763, 7
        %v765 = vsub.s32 %v762, %v764
        %v766 = vrot.slane %v757, %v765
        %v768 = vunpack.c.l.s4 1966171168
        %v769 = vunpack.c.0.s8 %v768
        %v770 = vlaneseq
        %v771 = vshrl.u32 %v770, 7
        %v772 = vsub.s32 %v769, %v771
        %v773 = vrot.slane %v759, %v772
        %v774 = vcombine.high %v766, %v766
        %v775 = vcombine.high %v773, %v773
        %v777 = vunpack.c.l.s4 1966171168
        %v778 = vunpack.c.0.s8 %v777
        %v779 = vlaneseq
        %v780 = vshrl.u32 %v779, 7
        %v781 = vsub.s32 %v778, %v780
        %v782 = vrot.slane %v766, %v781
        %v784 = vunpack.c.l.s4 1966171168
        %v785 = vunpack.c.0.s8 %v784
        %v786 = vlaneseq
        %v787 = vshrl.u32 %v786, 7
        %v788 = vsub.s32 %v785, %v787
        %v789 = vrot.slane %v773, %v788
        %v791 = vunpack.c.l.s4 1966171168
        %v792 = vunpack.c.0.s8 %v791
        %v793 = vlaneseq
        %v794 = vshrl.u32 %v793, 7
        %v795 = vsub.s32 %v792, %v794
        %v796 = vrot.slane %v774, %v795
        %v798 = vunpack.c.l.s4 1966171168
        %v799 = vunpack.c.0.s8 %v798
        %v800 = vlaneseq
        %v801 = vshrl.u32 %v800, 7
        %v802 = vsub.s32 %v799, %v801
        %v803 = vrot.slane %v775, %v802
        %v804 = vcombine.high %v782, %v782
        %v805 = vcombine.high %v789, %v789
        %v806 = vcombine.high %v796, %v796
        %v807 = vcombine.high %v803, %v803
        %816 = vst [vmem:[%s262 + $0x2] sm:$0x1] %v782
        %817 = vst [vmem:[%s262 + $0x6] sm:$0x1] %v796
        %818 = vst [vmem:[%s262 + $0xa] sm:$0x1] %v804
        %819 = vst [vmem:[%s262 + $0xe] sm:$0x1] %v806
        %820 = vst [vmem:[%s262 + $0x12] sm:$0x1] %v789
        %821 = vst [vmem:[%s262 + $0x16] sm:$0x1] %v803
        %822 = vst [vmem:[%s262 + $0x1a] sm:$0x1] %v805
        %823 = vst [vmem:[%s262 + $0x1e] sm:$0x1] %v807
        %v824 = vld [vmem:[%s271 + $0x3] sm:$0x1]
        %v825 = vld [vmem:[%s271 + $0x7] sm:$0x1]
        %v826 = vld [vmem:[%s271 + $0xb] sm:$0x1]
        %v827 = vld [vmem:[%s271 + $0xf] sm:$0x1]
        %v828 = vld [vmem:[%s271 + $0x13] sm:$0x1]
        %v829 = vld [vmem:[%s271 + $0x17] sm:$0x1]
        %v830 = vld [vmem:[%s271 + $0x1b] sm:$0x1]
        %v831 = vld [vmem:[%s271 + $0x1f] sm:$0x1]
        %v840 = vrot.slane %v825, 7
        %v841 = vsel %vm323, %v840, %v824
        %v842 = vrot.slane %v826, 6
        %v843 = vsel %vm326, %v842, %v841
        %v844 = vrot.slane %v827, 5
        %v845 = vsel %vm329, %v844, %v843
        %v846 = vrot.slane %v828, 4
        %v847 = vsel %vm332, %v846, %v845
        %v848 = vrot.slane %v829, 3
        %v849 = vsel %vm335, %v848, %v847
        %v850 = vrot.slane %v830, 2
        %v851 = vsel %vm338, %v850, %v849
        %v852 = vrot.slane %v831, 1
        %v853 = vsel %vm341, %v852, %v851
        %v854 = vsel %vm343, %v853, 0
        %856 = vmatprep.subr.mxu0 0.0
        %857 = vmatpush1.msra.mxu0 0.0
        %858 = vmatprep.subr.mxu0 0.0
        %859 = vmatpush1.msra.mxu0 0.0
        %860 = vmatprep.subr.mxu0 0.0
        %861 = vmatpush1.msra.mxu0 0.0
        %862 = vmatprep.subr.mxu0 0.0
        %863 = vmatpush1.msra.mxu0 0.0
        %864 = vmatprep.subr.mxu0 0.0
        %865 = vmatpush1.msra.mxu0 0.0
        %866 = vmatprep.subr.mxu0 0.0
        %867 = vmatpush1.msra.mxu0 0.0
        %868 = vmatprep.subr.mxu0 0.0
        %869 = vmatpush1.msra.mxu0 0.0
        %870 = vmatprep.subr.mxu0 0.0
        %871 = vmatpush1.msra.mxu0 0.0
        %872 = vmatprep.subr.mxu0 0.0
        %873 = vmatpush1.msra.mxu0 0.0
        %874 = vmatprep.subr.mxu0 0.0
        %875 = vmatpush1.msra.mxu0 0.0
        %876 = vmatprep.subr.mxu0 0.0
        %877 = vmatpush1.msra.mxu0 0.0
        %878 = vmatprep.subr.mxu0 0.0
        %879 = vmatpush1.msra.mxu0 0.0
        %880 = vmatprep.subr.mxu0 0.0
        %881 = vmatpush1.msra.mxu0 0.0
        %882 = vmatprep.subr.mxu0 0.0
        %883 = vmatpush1.msra.mxu0 0.0
        %884 = vmatprep.subr.mxu0 0.0
        %885 = vmatpush1.msra.mxu0 %v297
        %886 = vmatprep.subr.mxu0 0.0
        %887 = vmatpush1.msra.mxu0 %v296
        %888 = vmatprep.subr.mxu0 0.0
        %889 = vmatpush2.msra.mxu0 0.0
        %890 = vmatprep.subr.mxu0 0.0
        %891 = vmatpush2.msra.mxu0 0.0
        %892 = vmatprep.subr.mxu0 0.0
        %893 = vmatpush2.msra.mxu0 0.0
        %894 = vmatprep.subr.mxu0 0.0
        %895 = vmatpush2.msra.mxu0 0.0
        %896 = vmatprep.subr.mxu0 0.0
        %897 = vmatpush2.msra.mxu0 0.0
        %898 = vmatprep.subr.mxu0 0.0
        %899 = vmatpush2.msra.mxu0 0.0
        %900 = vmatprep.subr.mxu0 0.0
        %901 = vmatpush2.msra.mxu0 0.0
        %902 = vmatprep.subr.mxu0 0.0
        %903 = vmatpush2.msra.mxu0 0.0
        %904 = vmatprep.subr.mxu0 0.0
        %905 = vmatpush2.msra.mxu0 0.0
        %906 = vmatprep.subr.mxu0 0.0
        %907 = vmatpush2.msra.mxu0 0.0
        %908 = vmatprep.subr.mxu0 0.0
        %909 = vmatpush2.msra.mxu0 0.0
        %910 = vmatprep.subr.mxu0 0.0
        %911 = vmatpush2.msra.mxu0 0.0
        %912 = vmatprep.subr.mxu0 0.0
        %913 = vmatpush2.msra.mxu0 0.0
        %914 = vmatprep.subr.mxu0 0.0
        %915 = vmatpush2.msra.mxu0 0.0
        %916 = vmatprep.subr.mxu0 0.0
        %917 = vmatpush2.msra.mxu0 0.0
        %918 = vmatprep.subr.mxu0 0.0
        %919 = vmatpush2.msra.mxu0 0.0
        %920 = vmatprep.mubr.f32.mxu0 0.0
        %921 = vmatmul.mubr.f32.gmra.mxu0 %v854
        %v922 = vpop.f32.mrf.mxu0
        %v923 = vadd.f32 %v312, %v922
        %v924 = vpop.f32.mrf.mxu0
        %925 = vdwg.mxu0
        %v926 = vmax.f32 %v923, 0.0
        %v927 = vadd.f32 %v926, %v299
        %v929 = vcombine.high %v927, %v927
        %v931 = vunpack.c.l.s4 1966171168
        %v932 = vunpack.c.0.s8 %v931
        %v933 = vlaneseq
        %v934 = vshrl.u32 %v933, 7
        %v935 = vsub.s32 %v932, %v934
        %v936 = vrot.slane %v927, %v935
        %v938 = vunpack.c.l.s4 1966171168
        %v939 = vunpack.c.0.s8 %v938
        %v940 = vlaneseq
        %v941 = vshrl.u32 %v940, 7
        %v942 = vsub.s32 %v939, %v941
        %v943 = vrot.slane %v929, %v942
        %v944 = vcombine.high %v936, %v936
        %v945 = vcombine.high %v943, %v943
        %v947 = vunpack.c.l.s4 1966171168
        %v948 = vunpack.c.0.s8 %v947
        %v949 = vlaneseq
        %v950 = vshrl.u32 %v949, 7
        %v951 = vsub.s32 %v948, %v950
        %v952 = vrot.slane %v936, %v951
        %v954 = vunpack.c.l.s4 1966171168
        %v955 = vunpack.c.0.s8 %v954
        %v956 = vlaneseq
        %v957 = vshrl.u32 %v956, 7
        %v958 = vsub.s32 %v955, %v957
        %v959 = vrot.slane %v943, %v958
        %v961 = vunpack.c.l.s4 1966171168
        %v962 = vunpack.c.0.s8 %v961
        %v963 = vlaneseq
        %v964 = vshrl.u32 %v963, 7
        %v965 = vsub.s32 %v962, %v964
        %v966 = vrot.slane %v944, %v965
        %v968 = vunpack.c.l.s4 1966171168
        %v969 = vunpack.c.0.s8 %v968
        %v970 = vlaneseq
        %v971 = vshrl.u32 %v970, 7
        %v972 = vsub.s32 %v969, %v971
        %v973 = vrot.slane %v945, %v972
        %v974 = vcombine.high %v952, %v952
        %v975 = vcombine.high %v959, %v959
        %v976 = vcombine.high %v966, %v966
        %v977 = vcombine.high %v973, %v973
        %986 = vst [vmem:[%s262 + $0x3] sm:$0x1] %v952
        %987 = vst [vmem:[%s262 + $0x7] sm:$0x1] %v966
        %988 = vst [vmem:[%s262 + $0xb] sm:$0x1] %v974
        %989 = vst [vmem:[%s262 + $0xf] sm:$0x1] %v976
        %990 = vst [vmem:[%s262 + $0x13] sm:$0x1] %v959
        %991 = vst [vmem:[%s262 + $0x17] sm:$0x1] %v973
        %992 = vst [vmem:[%s262 + $0x1b] sm:$0x1] %v975
        %993 = vst [vmem:[%s262 + $0x1f] sm:$0x1] %v977
        %s994 = sand.u32 %s146, 1
        %s995 = scalar_lea.sflag [#allocation3], %s994
        %s996 = sand.u32 %s146, 1
        %s997 = smul.addr %s996, 32
        %s998 = scalar_lea.vmem [#allocation2], %s997
        // Predicated region
        $region37: #{positional_encoding_forward.1} parent=35 // pred_check
          %p999 = pneg %p156
        $region38: #{positional_encoding_forward.1} parent=35 // pred_check_branch
          %1001 = sbr.rel (%p999) target = $region40
        $region39: #{positional_encoding_forward.1} parent=35 // pred_region
          %s1002 = smul.u32 8, %s23
          %s1003 = ssub.s32 12, %s1002
          %p1004 = scmp.lt.s32.totalorder %s1003, 8
          %s1005 = scalar_select %p1004, %s1003, 8
          %s1006 = smul.u32 64, %s1005
          %s1008 = ssub.s32 512, %s1006
          %1009 = vsyncadd %s995, %s1008
          %p1010 = scmp.ne.s32.totalorder 0, %s1006
          %s1011 = sadd.s32 %s22, %s1002
          %s1012 = smul.addr %s1011, 64
          %s1013 = scalar_lea.hbm %s4, %s1012
          %s1014 = smul.u32 4, %s1005
          %s1015 = sshll.u32 %s998, 4
          %s1016 = int_to_ptr.vmem [resolvable:$true] %s1015
          %s1017 = sshll.u32 %s1014, 4
          %1021 = dma.vmem_to_hbm [thread:$0]  (%p1010), %s1016, %s1017, %s1013, %s995, 64, 64, 4
        $region40: #{positional_encoding_forward.1} parent=35 // pred_fallthru
          _
      $region36: #{positional_encoding_forward.1} parent=5 // pred_fallthru
        _
      %p1022 = scmp.le.s32.totalorder 2, %s13
      // Predicated region
      $region41: #{positional_encoding_forward.1} parent=5 // pred_check
        %p1023 = pneg %p1022
      $region42: #{positional_encoding_forward.1} parent=5 // pred_check_branch
        %1025 = sbr.rel (%p1023) target = $region44
      $region43: #{positional_encoding_forward.1} parent=5 // pred_region
        %s1026 = ssub.s32 %s13, 2
        // Predicated region
        $region45: #{positional_encoding_forward.1} parent=43 // pred_check
          %p1027 = pneg %p162
        $region46: #{positional_encoding_forward.1} parent=43 // pred_check_branch
          %1029 = sbr.rel (%p1027) target = $region48
        $region47: #{positional_encoding_forward.1} parent=43 // pred_region
          %s1030 = sand.u32 %s147, 1
          %s1031 = scalar_lea.sflag [#allocation3], %s1030
          %s1032 = sand.u32 %s147, 1
          %s1033 = smul.addr %s1032, 32
          %s1034 = scalar_lea.vmem [#allocation2], %s1033
          %1035 = dma.done %s1031, 512
        $region48: #{positional_encoding_forward.1} parent=43 // pred_fallthru
          _
      $region44: #{positional_encoding_forward.1} parent=5 // pred_fallthru
        _
    $region6: #{positional_encoding_forward.1} parent=1 // loop_footer
      %s17 = sadd.s32 1, %s13
    $region7: #{positional_encoding_forward.1} parent=1 // loop_footer_branch
      %12 = sbr.rel target = $region3
    $region8: #{positional_encoding_forward.1} parent=1 // loop_exit
      _
    %1036 = vsyncpa [#allocation3], 1
    %s1037 = scalar_lea.sflag [#allocation3], 1
    %1038 = vsyncpa %s1037, 1

</llo_original>
